<compile_context>
chip_gen: v6e
topology: v6e:2x2x1
jax: 0.10.0
libtpu: 0.0.40
codegen_flags: <defaults>
</compile_context>

<pallas_src>
import functools

import jax
import jax.numpy as jnp
import numpy as np
from jax.experimental import pallas as pl
from jax.experimental.pallas import tpu as pltpu


def _offset_sub_kernel(subed_ref, sub_ref, out_ref, pad_ref, *,
                       delays, W, dh, compute_dtype):
    """Processes one (W, T) block; window axis on sublanes, lanes dense."""
    subed = subed_ref[...].astype(compute_dtype)        # (W, T)
    sub = sub_ref[...].astype(compute_dtype)            # (W, T)
    T = sub.shape[1]

    if dh > 0:
        # Build the clamp-to-edge halo once in VMEM scratch.  Every delay then
        # becomes a static sublane-offset slice: no per-delay cmp/select.
        pad_ref[dh:dh + W, :] = sub
        pad_ref[0:dh, :] = jnp.broadcast_to(sub[0:1, :], (dh, T))
        pad_ref[dh + W:dh + W + dh, :] = jnp.broadcast_to(sub[W - 1:W, :], (dh, T))

    best = subed - sub                                   # delay == 0 candidate
    for delay in delays:
        if delay == 0:
            continue
        shifted = pad_ref[dh + delay:dh + delay + W, :]  # = sub[clip(w+delay)]
        res = subed - shifted
        take = jnp.abs(res) < jnp.abs(best)              # strict '<' => first-occurrence argmin
        best = jnp.where(take, res, best)

    out_ref[...] = best.astype(out_ref.dtype)


def _choose_lane_tile(L, rows, itemsize, budget_bytes=1 << 20):
    """Largest 128-multiple tile dividing L with rows*tile*itemsize <= budget."""
    if L % 128 != 0:
        return L                                   # full-extent lane block (legal)
    cap = (budget_bytes // max(1, rows * itemsize)) // 128 * 128
    cap = int(max(128, min(cap, L)))
    for cand in range(cap, 127, -128):
        if L % cand == 0:
            return cand
    return 128


@functools.partial(jax.jit, static_argnames=("d",))
def offset_subtraction(subed, sub, d):
    """Pallas implementation of OffsetSubtraction.forward (sub shares subed's shape)."""
    B, W, F = subed.shape
    if sub.shape != (B, W, F):
        raise ValueError("sub must share the (B, W, F) shape of subed")

    in_dtype = subed.dtype
    if jnp.issubdtype(in_dtype, jnp.floating) and jnp.dtype(in_dtype).itemsize < 4:
        compute_dtype = jnp.float32                # v5e has no bf16 VALU/EUP
    else:
        compute_dtype = in_dtype

    # Delay schedule.  |delay| > W-1 is equivalent to W-1 under clamp-to-edge,
    # so clamp + dedupe (order preserved => same first-occurrence argmin).
    dh = min(int(d), W - 1) if W > 1 else 0
    raw = [0] + list(range(1, d + 1)) + [-i for i in range(1, d + 1)]
    delays = tuple(dict.fromkeys(int(np.clip(x, -dh, dh)) for x in raw))

    itemsize = jnp.dtype(compute_dtype).itemsize
    rows = W + 2 * dh
    kernel = functools.partial(_offset_sub_kernel, delays=delays, W=W, dh=dh,
                               compute_dtype=compute_dtype)
    cparams = dict(vmem_limit_bytes=48 << 20)      # <= v7x's 64 MiB physical VMEM

    lane_friendly = (F % 128 == 0) or (F >= 128)

    if lane_friendly:
        # Native (B, W, F) layout: no wrapper transposes (minimum HBM traffic).
        TF = _choose_lane_tile(F, rows, itemsize)
        grid = (B, F // TF)
        spec = pl.BlockSpec((pl.Squeezed(), W, TF), lambda b, j: (b, 0, j))
        return pl.pallas_call(
            kernel,
            out_shape=jax.ShapeDtypeStruct((B, W, F), in_dtype),
            grid_spec=pltpu.PrefetchScalarGridSpec(
                num_scalar_prefetch=0,
                grid=grid,
                in_specs=[spec, spec],
                out_specs=spec,
                scratch_shapes=[pltpu.VMEM((rows, TF), compute_dtype)],
            ),
            compiler_params=pltpu.CompilerParams(
                dimension_semantics=("parallel", "parallel"), **cparams),
        )(subed, sub)

    # Small-F path: repack to (W, B*F) so lanes are dense; pad lanes to a
    # multiple of 128 (unmasked stores, and >=2 parallel grid steps when N>128).
    N = B * F
    subed2 = jnp.transpose(subed, (1, 0, 2)).reshape(W, N)
    sub2 = jnp.transpose(sub, (1, 0, 2)).reshape(W, N)
    Np = -(-N // 128) * 128
    if Np != N:
        padw = ((0, 0), (0, Np - N))
        subed2 = jnp.pad(subed2, padw)
        sub2 = jnp.pad(sub2, padw)

    TN = _choose_lane_tile(Np, rows, itemsize)
    grid = (Np // TN,)
    spec = pl.BlockSpec((W, TN), lambda j: (0, j))
    out2 = pl.pallas_call(
        kernel,
        out_shape=jax.ShapeDtypeStruct((W, Np), in_dtype),
        grid_spec=pltpu.PrefetchScalarGridSpec(
            num_scalar_prefetch=0,
            grid=grid,
            in_specs=[spec, spec],
            out_specs=spec,
            scratch_shapes=[pltpu.VMEM((rows, TN), compute_dtype)],
        ),
        compiler_params=pltpu.CompilerParams(
            dimension_semantics=("parallel",), **cparams),
    )(subed2, sub2)
    out2 = out2[:, :N]
    return out2.reshape(W, B, F).transpose(1, 0, 2)


def _reference(subed, sub, d):
    """Pure-JAX reference mirroring the torch module."""
    B, W, F = subed.shape
    delays = jnp.array([0] + list(range(1, d + 1)) + [-i for i in range(1, d + 1)],
                       dtype=jnp.int32)
    idx = jnp.clip(jnp.arange(W)[:, None] + delays[None, :], 0, W - 1)     # (W, K)
    gathered = sub[:, idx, :]                                              # (B, W, K, F)
    res = subed[:, :, None, :] - gathered                                  # (B, W, K, F)
    k = jnp.argmin(jnp.abs(res), axis=2)                                   # (B, W, F)
    out = jnp.take_along_axis(res, k[:, :, None, :], axis=2)[:, :, 0, :]
    return out


if __name__ == "__main__":
    key = jax.random.PRNGKey(0)
    k1, k2, k3, k4, k5, k6 = jax.random.split(key, 6)

    # Config 1: small F -> repack (W, B*F) path with lane padding.
    B1, W1, F1, d1 = 2, 8, 16, 2
    subed_a = jax.random.normal(k1, (B1, W1, F1), dtype=jnp.float32)
    sub_a = jax.random.normal(k2, (B1, W1, F1), dtype=jnp.float32)
    out_a = jax.block_until_ready(offset_subtraction(subed_a, sub_a, d=d1))
    np.testing.assert_allclose(np.asarray(out_a), np.asarray(_reference(subed_a, sub_a, d1)),
                               rtol=1e-5, atol=1e-5)

    # Config 2: lane-friendly F -> native-layout path (no transposes), 2-D grid.
    B2, W2, F2, d2 = 4, 8, 128, 3
    subed_b = jax.random.normal(k3, (B2, W2, F2), dtype=jnp.float32)
    sub_b = jax.random.normal(k4, (B2, W2, F2), dtype=jnp.float32)
    out_b = jax.block_until_ready(offset_subtraction(subed_b, sub_b, d=d2))
    np.testing.assert_allclose(np.asarray(out_b), np.asarray(_reference(subed_b, sub_b, d2)),
                               rtol=1e-5, atol=1e-5)

    # Config 3: native-layout path with W not a multiple of 8 (unaligned halo).
    B3, W3, F3, d3 = 2, 10, 128, 4
    subed_c = jax.random.normal(k5, (B3, W3, F3), dtype=jnp.float32)
    sub_c = jax.random.normal(k6, (B3, W3, F3), dtype=jnp.float32)
    out_c = jax.block_until_ready(offset_subtraction(subed_c, sub_c, d=d3))
    np.testing.assert_allclose(np.asarray(out_c), np.asarray(_reference(subed_c, sub_c, d3)),
                               rtol=1e-5, atol=1e-5)

    print("KERNEL_OK")
</pallas_src>

<mosaic_0001>
module attributes {stable_mosaic.version = 11 : i64} {
  func.func @_offset_sub_kernel(%arg0: i32, %arg1: memref<8x128xf32, #tpu.memory_space<vmem>>, %arg2: memref<8x128xf32, #tpu.memory_space<vmem>>, %arg3: memref<8x128xf32, #tpu.memory_space<vmem>>, %arg4: memref<12x128xf32, #tpu.memory_space<vmem>>) attributes {dimension_semantics = [#tpu.dimension_semantics<parallel>], iteration_bounds = array<i64: 1>, scalar_prefetch = 0 : i64, scratch_operands = 1 : i64, tpu.core_type = #tpu.core_type<tc>, window_params = [{transform_indices = @transform_0, window_bounds = array<i64: 8, 128>}, {transform_indices = @transform_1, window_bounds = array<i64: 8, 128>}, {transform_indices = @transform_2, window_bounds = array<i64: 8, 128>}]} {
    %c0 = arith.constant 0 : index
    %c0_0 = arith.constant 0 : index
    %0 = vector.load %arg1[%c0, %c0_0] : memref<8x128xf32, #tpu.memory_space<vmem>>, vector<8x128xf32>
    %c0_1 = arith.constant 0 : index
    %c0_2 = arith.constant 0 : index
    %1 = vector.load %arg2[%c0_1, %c0_2] : memref<8x128xf32, #tpu.memory_space<vmem>>, vector<8x128xf32>
    %c2 = arith.constant 2 : index
    %c0_3 = arith.constant 0 : index
    %2 = vector.load %arg4[%c2, %c0_3] : memref<12x128xf32, #tpu.memory_space<vmem>>, vector<8x128xf32>
    tpu.vector_store %arg4[%c2, %c0_3], %1 {strides = array<i32>} : memref<12x128xf32, #tpu.memory_space<vmem>>, vector<8x128xf32>,
    %3 = vector.extract_strided_slice %1 {offsets = [0, 0], sizes = [1, 128], strides = [1, 1]} : vector<8x128xf32> to vector<1x128xf32>
    %4 = vector.shape_cast %3 : vector<1x128xf32> to vector<1x128xf32>
    %5 = vector.broadcast %4 : vector<1x128xf32> to vector<2x128xf32>
    %c0_4 = arith.constant 0 : index
    %c0_5 = arith.constant 0 : index
    %6 = vector.load %arg4[%c0_4, %c0_5] : memref<12x128xf32, #tpu.memory_space<vmem>>, vector<2x128xf32>
    tpu.vector_store %arg4[%c0_4, %c0_5], %5 {strides = array<i32>} : memref<12x128xf32, #tpu.memory_space<vmem>>, vector<2x128xf32>,
    %7 = vector.extract_strided_slice %1 {offsets = [7, 0], sizes = [1, 128], strides = [1, 1]} : vector<8x128xf32> to vector<1x128xf32>
    %8 = vector.shape_cast %7 : vector<1x128xf32> to vector<1x128xf32>
    %9 = vector.broadcast %8 : vector<1x128xf32> to vector<2x128xf32>
    %c10 = arith.constant 10 : index
    %c0_6 = arith.constant 0 : index
    %10 = vector.load %arg4[%c10, %c0_6] : memref<12x128xf32, #tpu.memory_space<vmem>>, vector<2x128xf32>
    tpu.vector_store %arg4[%c10, %c0_6], %9 {strides = array<i32>} : memref<12x128xf32, #tpu.memory_space<vmem>>, vector<2x128xf32>,
    %11 = arith.subf %0, %1 : vector<8x128xf32>
    %c3 = arith.constant 3 : index
    %c0_7 = arith.constant 0 : index
    %12 = vector.load %arg4[%c3, %c0_7] : memref<12x128xf32, #tpu.memory_space<vmem>>, vector<8x128xf32>
    %13 = arith.subf %0, %12 : vector<8x128xf32>
    %14 = math.absf %13 : vector<8x128xf32>
    %15 = math.absf %11 : vector<8x128xf32>
    %16 = arith.cmpf olt, %14, %15 : vector<8x128xf32>
    %17 = arith.select %16, %13, %11 : vector<8x128xi1>, vector<8x128xf32>
    %c4 = arith.constant 4 : index
    %c0_8 = arith.constant 0 : index
    %18 = vector.load %arg4[%c4, %c0_8] : memref<12x128xf32, #tpu.memory_space<vmem>>, vector<8x128xf32>
    %19 = arith.subf %0, %18 : vector<8x128xf32>
    %20 = math.absf %19 : vector<8x128xf32>
    %21 = math.absf %17 : vector<8x128xf32>
    %22 = arith.cmpf olt, %20, %21 : vector<8x128xf32>
    %23 = arith.select %22, %19, %17 : vector<8x128xi1>, vector<8x128xf32>
    %c1 = arith.constant 1 : index
    %c0_9 = arith.constant 0 : index
    %24 = vector.load %arg4[%c1, %c0_9] : memref<12x128xf32, #tpu.memory_space<vmem>>, vector<8x128xf32>
    %25 = arith.subf %0, %24 : vector<8x128xf32>
    %26 = math.absf %25 : vector<8x128xf32>
    %27 = math.absf %23 : vector<8x128xf32>
    %28 = arith.cmpf olt, %26, %27 : vector<8x128xf32>
    %29 = arith.select %28, %25, %23 : vector<8x128xi1>, vector<8x128xf32>
    %c0_10 = arith.constant 0 : index
    %c0_11 = arith.constant 0 : index
    %30 = vector.load %arg4[%c0_10, %c0_11] : memref<12x128xf32, #tpu.memory_space<vmem>>, vector<8x128xf32>
    %31 = arith.subf %0, %30 : vector<8x128xf32>
    %32 = math.absf %31 : vector<8x128xf32>
    %33 = math.absf %29 : vector<8x128xf32>
    %34 = arith.cmpf olt, %32, %33 : vector<8x128xf32>
    %35 = arith.select %34, %31, %29 : vector<8x128xi1>, vector<8x128xf32>
    %c0_12 = arith.constant 0 : index
    %c0_13 = arith.constant 0 : index
    %36 = vector.load %arg3[%c0_12, %c0_13] : memref<8x128xf32, #tpu.memory_space<vmem>>, vector<8x128xf32>
    tpu.vector_store %arg3[%c0_12, %c0_13], %35 {strides = array<i32>} : memref<8x128xf32, #tpu.memory_space<vmem>>, vector<8x128xf32>,
    return
  }
  func.func @transform_0(%arg0: i32) -> (i32, i32) {
    %c0_i32 = arith.constant 0 : i32
    %c0_i32_0 = arith.constant 0 : i32
    return %c0_i32, %arg0 : i32, i32
  }
  func.func @transform_1(%arg0: i32) -> (i32, i32) {
    %c0_i32 = arith.constant 0 : i32
    %c0_i32_0 = arith.constant 0 : i32
    return %c0_i32, %arg0 : i32, i32
  }
  func.func @transform_2(%arg0: i32) -> (i32, i32) {
    %c0_i32 = arith.constant 0 : i32
    %c0_i32_0 = arith.constant 0 : i32
    return %c0_i32, %arg0 : i32, i32
  }
}

</mosaic_0001>

<llo_original>
// kernel: offset_subtraction.1
$region0: #{offset_subtraction.1}
  #allocation0 [shape = 'u32[]', space=smem, size = 0x4, offset = 0x4, fixed_abs, tag = 'smem constant byte address 0x4 - core index']
  #allocation1 [shape = 'u32[144,128]{1,0:T(1,128)}', space=vmem, size = 0x12000, scoped, tag = 'internal scratch']
  #allocation2 [shape = 'f32[12,128]{1,0:T(8,128)}', space=vmem, size = 0x2000, scoped, tag = 'scratch operand']
  %s0 = inlined_call_operand.vmem [shape: f32[8,128], index: 0, kind: input, shape index: {}]
  %s1 = inlined_call_operand.vmem [shape: f32[8,128], index: 1, kind: input, shape index: {}]
  %s2 = inlined_call_operand.vmem [shape: f32[8,128], index: 2, kind: output, shape index: {}]
  %s3 = sld [smem:[#allocation0]]
  $region18: #{offset_subtraction.1} parent=0
    _
  %s5 = ssub.s32 1, %s3
  %s6 = scalar_select 0, %s5, %s3
  // Predicated region
  $region2: #{offset_subtraction.1} parent=0 // pred_check
    _
  $region3: #{offset_subtraction.1} parent=0 // pred_check_branch
    %8 = sbr.rel (0) target = $region5
  $region4: #{offset_subtraction.1} parent=0 // pred_region
    _
  $region5: #{offset_subtraction.1} parent=0 // pred_fallthru
    _
  // Predicated region
  $region6: #{offset_subtraction.1} parent=0 // pred_check
    _
  $region7: #{offset_subtraction.1} parent=0 // pred_check_branch
    %10 = sbr.rel (0) target = $region9
  $region8: #{offset_subtraction.1} parent=0 // pred_region
    _
  $region9: #{offset_subtraction.1} parent=0 // pred_fallthru
    _
  %v11 = vld [vmem:[%s0] sm:$0xff]
  %v12 = vld [vmem:[%s1] sm:$0xff]
  %13 = vst [vmem:[#allocation2 + $0x2] sm:$0xff] %v12
  %v14 = vlaneseq
  %v15 = vshrl.u32 %v14, 7
  %v16 = vsub.s32 0, %v15
  %v17 = vrot.slane %v12, %v16
  %18 = vst [vmem:[#allocation2] sm:$0x3] %v17
  %v19 = vlaneseq
  %v20 = vshrl.u32 %v19, 7
  %v21 = vsub.s32 7, %v20
  %v22 = vrot.slane %v12, %v21
  %23 = vst [vmem:[#allocation2 + $0xa] sm:$0x3] %v22
  %v24 = vsub.f32 %v11, %v12
  %v25 = vld [vmem:[#allocation2 + $0x3] sm:$0xff]
  %v26 = vsub.f32 %v11, %v25
  %v27 = vand.u32 2147483647, %v26
  %v28 = vand.u32 2147483647, %v24
  %vm29 = vcmp.lt.f32.partialorder %v27, %v28
  %v30 = vsel %vm29, %v26, %v24
  %v31 = vld [vmem:[#allocation2 + $0x4] sm:$0xff]
  %v32 = vsub.f32 %v11, %v31
  %v33 = vand.u32 2147483647, %v32
  %v34 = vand.u32 2147483647, %v30
  %vm35 = vcmp.lt.f32.partialorder %v33, %v34
  %v36 = vsel %vm35, %v32, %v30
  %v37 = vld [vmem:[#allocation2 + $0x1] sm:$0xff]
  %v38 = vsub.f32 %v11, %v37
  %v39 = vand.u32 2147483647, %v38
  %v40 = vand.u32 2147483647, %v36
  %vm41 = vcmp.lt.f32.partialorder %v39, %v40
  %v42 = vsel %vm41, %v38, %v36
  %v43 = vld [vmem:[#allocation2] sm:$0xff]
  %v44 = vsub.f32 %v11, %v43
  %v45 = vand.u32 2147483647, %v44
  %v46 = vand.u32 2147483647, %v42
  %vm47 = vcmp.lt.f32.partialorder %v45, %v46
  %v48 = vsel %vm47, %v44, %v42
  %49 = vst [vmem:[%s2] sm:$0xff] %v48
  // Predicated region
  $region10: #{offset_subtraction.1} parent=0 // pred_check
    _
  $region11: #{offset_subtraction.1} parent=0 // pred_check_branch
    %51 = sbr.rel (0) target = $region13
  $region12: #{offset_subtraction.1} parent=0 // pred_region
    _
  $region13: #{offset_subtraction.1} parent=0 // pred_fallthru
    _
  // Predicated region
  $region14: #{offset_subtraction.1} parent=0 // pred_check
    _
  $region15: #{offset_subtraction.1} parent=0 // pred_check_branch
    %53 = sbr.rel (0) target = $region17
  $region16: #{offset_subtraction.1} parent=0 // pred_region
    _
  $region17: #{offset_subtraction.1} parent=0 // pred_fallthru
    _

</llo_original>
